<compile_context>
chip_gen: v7x
topology: tpu7x:2x2x1
jax: 0.10.0
libtpu: 0.0.40
codegen_flags: <defaults>
</compile_context>

<pallas_src>
import functools

import jax
import jax.numpy as jnp
from jax import lax
from jax.experimental import pallas as pl
from jax.experimental.pallas import tpu as pltpu


def _round_up(x: int, m: int) -> int:
    return (x + m - 1) // m * m


def _mlp_relu_k_kernel(x_ref, w1_ref, b1_ref, w2_ref, o_ref, *, k: int):
    # Feature-major orientation: the batch dimension lives on lanes.
    #   x_ref  : (D, TN)   input columns (one column per batch element)
    #   w1_ref : (H, D)    fc1.weight (PyTorch layout, no transpose)
    #   b1_ref : (H, 1)    fc1.bias
    #   w2_ref : (C, H)    fc2.weight (PyTorch layout, no transpose)
    #   o_ref  : (C, TN)
    h = lax.dot_general(                        # fc1: (H, D) x (D, TN) -> (H, TN)
        w1_ref[...], x_ref[...],
        dimension_numbers=(((1,), (0,)), ((), ())),
        preferred_element_type=jnp.float32,
    )
    h = h + b1_ref[...]                         # bias broadcast over columns
    a = jnp.maximum(h, 0.0)                     # ReLU
    # ReLU^k with a static multiply chain (VPU), never pow = exp*log on the EUP.
    if k == 2:
        a = a * a
    elif k == 3:
        a = a * a * a
    elif k != 1:
        a = lax.integer_pow(a, k)
    a = a.astype(w2_ref.dtype)                  # match MXU operand dtype (f32 / bf16)
    o_ref[...] = lax.dot_general(               # fc2: (C, H) x (H, TN) -> (C, TN)
        w2_ref[...], a,
        dimension_numbers=(((1,), (0,)), ((), ())),
        preferred_element_type=jnp.float32,
    ).astype(o_ref.dtype)


def _pick_tile(n: int, tile_n: int) -> int:
    """Batch columns per grid step.

    - Tiny N: a single block equal to the full array (exact-dims rule).
    - Otherwise: multiple of 128 lanes, at least 512 columns per step (so per-step
      DMA >> fixed step overhead), at least 2 steps (v7x megacore), capped at tile_n.
    """
    if n <= 512:
        return n
    return min(tile_n, max(512, _round_up(pl.cdiv(n, 2), 128)))


def mlp_relu_k_forward(x, w1, b1, w2, k: int = 1, *, tile_n: int = 8192,
                       use_bf16: bool = False):
    """Pallas forward pass matching the PyTorch module.

    x  : (N, input_size)            float32
    w1 : (hidden, input_size)       fc1.weight  (PyTorch layout, NOT transposed)
    b1 : (hidden,)                  fc1.bias
    w2 : (num_classes, hidden)      fc2.weight  (PyTorch layout, no bias)
    returns: (N, num_classes)       float32
    """
    n, d = x.shape
    hdim, d2 = w1.shape
    assert d == d2
    c, h2 = w2.shape
    assert hdim == h2

    op_dtype = jnp.bfloat16 if use_bf16 else jnp.float32
    xT = jnp.asarray(x, op_dtype).T                    # (D, N): one wrapper transpose
    w1f = jnp.asarray(w1, op_dtype)                    # (H, D)
    w2f = jnp.asarray(w2, op_dtype)                    # (C, H)
    b1r = jnp.asarray(b1, jnp.float32).reshape(hdim, 1)  # (H, 1)

    tn = _pick_tile(n, tile_n)
    grid = (pl.cdiv(n, tn),)                           # no pad: partial last block OK

    kernel = functools.partial(_mlp_relu_k_kernel, k=int(k))

    itemsize = jnp.dtype(op_dtype).itemsize
    cost = pl.CostEstimate(
        flops=2 * n * (d * hdim + hdim * c),
        transcendentals=0,
        bytes_accessed=(n * d * itemsize              # x read
                        + n * c * 4                   # out write (f32)
                        + (hdim * d + c * hdim) * itemsize + hdim * 4),  # weights/bias
    )

    out_t = pl.pallas_call(
        kernel,
        out_shape=jax.ShapeDtypeStruct((c, n), jnp.float32),
        grid=grid,
        in_specs=[
            pl.BlockSpec((d, tn), lambda i: (0, i)),       # x tile: pipelined, lane-dense
            pl.BlockSpec((hdim, d), lambda i: (0, 0)),     # w1: VMEM-resident
            pl.BlockSpec((hdim, 1), lambda i: (0, 0)),     # b1: VMEM-resident
            pl.BlockSpec((c, hdim), lambda i: (0, 0)),     # w2: VMEM-resident
        ],
        out_specs=pl.BlockSpec((c, tn), lambda i: (0, i)), # lane-dense output stores
        compiler_params=pltpu.CompilerParams(
            dimension_semantics=("parallel",),             # batch tiles independent
            vmem_limit_bytes=32 * 1024 * 1024,             # ample: ~3 MiB used at TN=8192
        ),
        cost_estimate=cost,
    )(xT, w1f, b1r, w2f)

    return out_t.T                                         # (N, C); tiny (C=2) transpose


def _reference_forward(x, w1, b1, w2, k):
    h = x @ w1.T + b1
    return (jnp.maximum(h, 0.0) ** k) @ w2.T


if __name__ == "__main__":
    # Deterministic parameter / input construction (synthetic, no checkpoint).
    input_size = 4
    hidden_size1 = 32
    num_classes = 2
    k = 2

    key = jax.random.PRNGKey(0)
    kx, kw1, kb1, kw2, kx2 = jax.random.split(key, 5)

    # nn.Linear-style init scale (uniform in [-1/sqrt(fan_in), 1/sqrt(fan_in)])
    lim1 = 1.0 / (input_size ** 0.5)
    lim2 = 1.0 / (hidden_size1 ** 0.5)
    w1 = jax.random.uniform(kw1, (hidden_size1, input_size), jnp.float32, -lim1, lim1)
    b1 = jax.random.uniform(kb1, (hidden_size1,), jnp.float32, -lim1, lim1)
    w2 = jax.random.uniform(kw2, (num_classes, hidden_size1), jnp.float32, -lim2, lim2)

    # Small case (single full-array block).
    batch = 8
    x = jax.random.normal(kx, (batch, input_size), dtype=jnp.float32)
    out = jax.block_until_ready(mlp_relu_k_forward(x, w1, b1, w2, k=k))
    ref = _reference_forward(x, w1, b1, w2, k)
    assert out.shape == (batch, num_classes)
    assert jnp.allclose(out, ref, atol=1e-5, rtol=1e-5), "mismatch vs reference (small)"

    # Larger ragged case: multi-step grid (>=2 steps) + partial boundary block, no pad.
    batch2 = 1000
    x2 = jax.random.normal(kx2, (batch2, input_size), dtype=jnp.float32)
    out2 = jax.block_until_ready(mlp_relu_k_forward(x2, w1, b1, w2, k=k))
    ref2 = _reference_forward(x2, w1, b1, w2, k)
    assert out2.shape == (batch2, num_classes)
    assert jnp.allclose(out2, ref2, atol=1e-5, rtol=1e-5), "mismatch vs reference (tiled)"

    # bf16 MXU-operand path (f32 accumulation): loose tolerance due to input/weight
    # quantization; use for throughput when the caller's tolerance allows.
    out3 = jax.block_until_ready(mlp_relu_k_forward(x2, w1, b1, w2, k=k, use_bf16=True))
    assert out3.shape == (batch2, num_classes)
    assert jnp.allclose(out3, ref2, atol=5e-2, rtol=5e-2), "mismatch vs reference (bf16)"

    # TODO(synk): evaluate_derivative (heaviside / k*relu^(k-1) directional derivative)
    # not implemented; only forward() is requested.
    print("KERNEL_OK")
</pallas_src>

<mosaic_0001>
module attributes {stable_mosaic.version = 11 : i64} {
  func.func @_mlp_relu_k_kernel(%arg0: i32, %arg1: memref<4x8xf32, #tpu.memory_space<vmem>>, %arg2: memref<32x4xf32, #tpu.memory_space<vmem>>, %arg3: memref<32x1xf32, #tpu.memory_space<vmem>>, %arg4: memref<2x32xf32, #tpu.memory_space<vmem>>, %arg5: memref<2x8xf32, #tpu.memory_space<vmem>>) attributes {dimension_semantics = [#tpu.dimension_semantics<parallel>], iteration_bounds = array<i64: 1>, scalar_prefetch = 0 : i64, scratch_operands = 0 : i64, tpu.core_type = #tpu.core_type<tc>, window_params = [{transform_indices = @transform_0, window_bounds = array<i64: 4, 8>}, {pipeline_mode = #tpu.pipeline_mode<synchronous>, transform_indices = @transform_1, window_bounds = array<i64: 32, 4>}, {pipeline_mode = #tpu.pipeline_mode<synchronous>, transform_indices = @transform_2, window_bounds = array<i64: 32, 1>}, {pipeline_mode = #tpu.pipeline_mode<synchronous>, transform_indices = @transform_3, window_bounds = array<i64: 2, 32>}, {transform_indices = @transform_4, window_bounds = array<i64: 2, 8>}]} {
    %c0 = arith.constant 0 : index
    %c0_0 = arith.constant 0 : index
    %0 = vector.load %arg2[%c0, %c0_0] : memref<32x4xf32, #tpu.memory_space<vmem>>, vector<32x4xf32>
    %c0_1 = arith.constant 0 : index
    %c0_2 = arith.constant 0 : index
    %1 = vector.load %arg1[%c0_1, %c0_2] : memref<4x8xf32, #tpu.memory_space<vmem>>, vector<4x8xf32>
    %cst = arith.constant dense<0.000000e+00> : vector<32x8xf32>
    %2 = tpu.matmul %0, %1, %cst {dimension_numbers = #tpu.dot_dimension_numbers<[1], [0], [0], [1], [0, 0, 1, 1], [], []>} : vector<32x4xf32>, vector<4x8xf32>, vector<32x8xf32> -> vector<32x8xf32>
    %c0_3 = arith.constant 0 : index
    %c0_4 = arith.constant 0 : index
    %3 = vector.load %arg3[%c0_3, %c0_4] : memref<32x1xf32, #tpu.memory_space<vmem>>, vector<32x1xf32>
    %4 = vector.broadcast %3 : vector<32x1xf32> to vector<32x8xf32>
    %5 = arith.addf %2, %4 : vector<32x8xf32>
    %cst_5 = arith.constant 0.000000e+00 : f32
    %6 = vector.broadcast %cst_5 : f32 to vector<32x8xf32>
    %7 = arith.maximumf %5, %6 : vector<32x8xf32>
    %8 = arith.mulf %7, %7 : vector<32x8xf32>
    %c0_6 = arith.constant 0 : index
    %c0_7 = arith.constant 0 : index
    %9 = vector.load %arg4[%c0_6, %c0_7] : memref<2x32xf32, #tpu.memory_space<vmem>>, vector<2x32xf32>
    %cst_8 = arith.constant dense<0.000000e+00> : vector<2x8xf32>
    %10 = tpu.matmul %9, %8, %cst_8 {dimension_numbers = #tpu.dot_dimension_numbers<[1], [0], [0], [1], [0, 0, 1, 1], [], []>} : vector<2x32xf32>, vector<32x8xf32>, vector<2x8xf32> -> vector<2x8xf32>
    %c0_9 = arith.constant 0 : index
    %c0_10 = arith.constant 0 : index
    %11 = vector.load %arg5[%c0_9, %c0_10] : memref<2x8xf32, #tpu.memory_space<vmem>>, vector<2x8xf32>
    tpu.vector_store %arg5[%c0_9, %c0_10], %10 {strides = array<i32>} : memref<2x8xf32, #tpu.memory_space<vmem>>, vector<2x8xf32>,
    return
  }
  func.func @transform_0(%arg0: i32) -> (i32, i32) {
    %c0_i32 = arith.constant 0 : i32
    %c0_i32_0 = arith.constant 0 : i32
    return %c0_i32, %arg0 : i32, i32
  }
  func.func @transform_1(%arg0: i32) -> (i32, i32) {
    %c0_i32 = arith.constant 0 : i32
    %c0_i32_0 = arith.constant 0 : i32
    %c0_i32_1 = arith.constant 0 : i32
    return %c0_i32, %c0_i32_0 : i32, i32
  }
  func.func @transform_2(%arg0: i32) -> (i32, i32) {
    %c0_i32 = arith.constant 0 : i32
    %c0_i32_0 = arith.constant 0 : i32
    %c0_i32_1 = arith.constant 0 : i32
    return %c0_i32, %c0_i32_0 : i32, i32
  }
  func.func @transform_3(%arg0: i32) -> (i32, i32) {
    %c0_i32 = arith.constant 0 : i32
    %c0_i32_0 = arith.constant 0 : i32
    %c0_i32_1 = arith.constant 0 : i32
    return %c0_i32, %c0_i32_0 : i32, i32
  }
  func.func @transform_4(%arg0: i32) -> (i32, i32) {
    %c0_i32 = arith.constant 0 : i32
    %c0_i32_0 = arith.constant 0 : i32
    return %c0_i32, %arg0 : i32, i32
  }
}

</mosaic_0001>

<llo_original>
// kernel: tpu_custom_call.1
$region0: #{tpu_custom_call.1}
  #allocation0 [shape = 'u32[]', space=smem, size = 0x4, offset = 0x4, fixed_abs, tag = 'smem constant byte address 0x4 - core index']
  #allocation1 [shape = 'u32[144,128]{1,0:T(1,128)}', space=vmem, size = 0x12000, scoped, tag = 'internal scratch']
  %s0 = inlined_call_operand.vmem [shape: f32[4,8], index: 0, kind: input, shape index: {}]
  %s1 = inlined_call_operand.vmem [shape: f32[32,4], index: 1, kind: input, shape index: {}]
  %s2 = inlined_call_operand.vmem [shape: f32[32,1], index: 2, kind: input, shape index: {}]
  %s3 = inlined_call_operand.vmem [shape: f32[2,32], index: 3, kind: input, shape index: {}]
  %s4 = inlined_call_operand.hbm [shape: f32[2,8], index: 4, kind: output, shape index: {}]
  %s5 = sld [smem:[#allocation0]]
  $region26: #{tpu_custom_call.1} parent=0
    _
  %s7 = ssub.s32 1, %s5
  %s8 = scalar_select 0, %s7, %s5
  $region1: #{tpu_custom_call.1} parent=0
    #allocation2 [shape = 'u8[1024]{0}', space=vmem, size = 0x400, scoped, tag = 'output window, operand 0, single buffered']
    #allocation3 [shape = 's32[1]{0}', space=sflag, size = 0x4, scoped, tag = 'scoped memory for tpu_custom_call.1']
    %9 = vsyncpa [#allocation3], 0
    // Predicated region
    $region2: #{tpu_custom_call.1} parent=1 // pred_check
      _
    $region3: #{tpu_custom_call.1} parent=1 // pred_check_branch
      %11 = sbr.rel (0) target = $region5
    $region4: #{tpu_custom_call.1} parent=1 // pred_region
      _
    $region5: #{tpu_custom_call.1} parent=1 // pred_fallthru
      _
    // Predicated region
    $region6: #{tpu_custom_call.1} parent=1 // pred_check
      _
    $region7: #{tpu_custom_call.1} parent=1 // pred_check_branch
      %13 = sbr.rel (0) target = $region9
    $region8: #{tpu_custom_call.1} parent=1 // pred_region
      _
    $region9: #{tpu_custom_call.1} parent=1 // pred_fallthru
      _
    // Predicated region
    $region10: #{tpu_custom_call.1} parent=1 // pred_check
      _
    $region11: #{tpu_custom_call.1} parent=1 // pred_check_branch
      %15 = sbr.rel (0) target = $region13
    $region12: #{tpu_custom_call.1} parent=1 // pred_region
      _
    $region13: #{tpu_custom_call.1} parent=1 // pred_fallthru
      _
    // Predicated region
    $region14: #{tpu_custom_call.1} parent=1 // pred_check
      _
    $region15: #{tpu_custom_call.1} parent=1 // pred_check_branch
      %17 = sbr.rel (0) target = $region17
    $region16: #{tpu_custom_call.1} parent=1 // pred_region
      _
    $region17: #{tpu_custom_call.1} parent=1 // pred_fallthru
      _
    %v18 = vld [vmem:[%s1] sm:$0xff]
    %v19 = vld [vmem:[%s1 + $0x8] sm:$0xff]
    %v20 = vld [vmem:[%s1 + $0x10] sm:$0xff]
    %v21 = vld [vmem:[%s1 + $0x18] sm:$0xff]
    %v22 = vld [vmem:[%s0] sm:$0xf]
    %v23 = vld [vmem:[%s2] sm:$0xff]
    %v24 = vld [vmem:[%s2 + $0x8] sm:$0xff]
    %v25 = vld [vmem:[%s2 + $0x10] sm:$0xff]
    %v26 = vld [vmem:[%s2 + $0x18] sm:$0xff]
    %28 = vset.pattern.permute.xlu0 0
    %29 = vperm.xlu0 %28, %v23
    %v30 = vpop.permute.xlu0 %29
    %33 = vset.pattern.permute.xlu0 0
    %34 = vperm.xlu0 %33, %v24
    %v35 = vpop.permute.xlu0 %34
    %38 = vset.pattern.permute.xlu0 0
    %39 = vperm.xlu0 %38, %v25
    %v40 = vpop.permute.xlu0 %39
    %43 = vset.pattern.permute.xlu0 0
    %44 = vperm.xlu0 %43, %v26
    %v45 = vpop.permute.xlu0 %44
    %vm47 = vcmask 31744
    %v49 = vsel %vm47, %v18, 0
    %v52 = vsel %vm47, %v19, 0
    %v55 = vsel %vm47, %v20, 0
    %v58 = vsel %vm47, %v21, 0
    %vm60 = vcmask 1043456
    %v62 = vsel %vm60, %v22, 0
    %64 = vmatprep.subr.mxu0 0.0
    %65 = vmatpush1.msra.mxu0 %v62
    %66 = vmatprep.subr.mxu0 0.0
    %67 = vmatpush1.msra.mxu0 0.0
    %68 = vmatprep.subr.mxu0 0.0
    %69 = vmatpush1.msra.mxu0 0.0
    %70 = vmatprep.subr.mxu0 0.0
    %71 = vmatpush1.msra.mxu0 0.0
    %72 = vmatprep.subr.mxu0 0.0
    %73 = vmatpush1.msra.mxu0 0.0
    %74 = vmatprep.subr.mxu0 0.0
    %75 = vmatpush1.msra.mxu0 0.0
    %76 = vmatprep.subr.mxu0 0.0
    %77 = vmatpush1.msra.mxu0 0.0
    %78 = vmatprep.subr.mxu0 0.0
    %79 = vmatpush1.msra.mxu0 0.0
    %80 = vmatprep.subr.mxu0 0.0
    %81 = vmatpush1.msra.mxu0 0.0
    %82 = vmatprep.subr.mxu0 0.0
    %83 = vmatpush1.msra.mxu0 0.0
    %84 = vmatprep.subr.mxu0 0.0
    %85 = vmatpush1.msra.mxu0 0.0
    %86 = vmatprep.subr.mxu0 0.0
    %87 = vmatpush1.msra.mxu0 0.0
    %88 = vmatprep.subr.mxu0 0.0
    %89 = vmatpush1.msra.mxu0 0.0
    %90 = vmatprep.subr.mxu0 0.0
    %91 = vmatpush1.msra.mxu0 0.0
    %92 = vmatprep.subr.mxu0 0.0
    %93 = vmatpush1.msra.mxu0 0.0
    %94 = vmatprep.subr.mxu0 0.0
    %95 = vmatpush1.msra.mxu0 0.0
    %96 = vmatprep.subr.mxu0 0.0
    %97 = vmatpush1.msra.mxu0 0.0
    %98 = vmatprep.subr.mxu0 0.0
    %99 = vmatpush1.msra.mxu0 0.0
    %100 = vmatprep.subr.mxu0 0.0
    %101 = vmatpush1.msra.mxu0 0.0
    %102 = vmatprep.subr.mxu0 0.0
    %103 = vmatpush1.msra.mxu0 0.0
    %104 = vmatprep.subr.mxu0 0.0
    %105 = vmatpush1.msra.mxu0 0.0
    %106 = vmatprep.subr.mxu0 0.0
    %107 = vmatpush1.msra.mxu0 0.0
    %108 = vmatprep.subr.mxu0 0.0
    %109 = vmatpush1.msra.mxu0 0.0
    %110 = vmatprep.subr.mxu0 0.0
    %111 = vmatpush1.msra.mxu0 0.0
    %112 = vmatprep.subr.mxu0 0.0
    %113 = vmatpush1.msra.mxu0 0.0
    %114 = vmatprep.subr.mxu0 0.0
    %115 = vmatpush1.msra.mxu0 0.0
    %116 = vmatprep.subr.mxu0 0.0
    %117 = vmatpush1.msra.mxu0 0.0
    %118 = vmatprep.subr.mxu0 0.0
    %119 = vmatpush1.msra.mxu0 0.0
    %120 = vmatprep.subr.mxu0 0.0
    %121 = vmatpush1.msra.mxu0 0.0
    %122 = vmatprep.subr.mxu0 0.0
    %123 = vmatpush1.msra.mxu0 0.0
    %124 = vmatprep.subr.mxu0 0.0
    %125 = vmatpush1.msra.mxu0 0.0
    %126 = vmatprep.subr.mxu0 0.0
    %127 = vmatpush1.msra.mxu0 0.0
    %128 = vmatprep.mubr.f32.mxu0 0.0
    %129 = vmatmul.mubr.f32.gmra.mrb[0].mxu0 %v49
    %v130 = vpop.f32.mrb[0].mxu0
    %v131 = vadd.f32 %v30, %v130
    %v132 = vpop.f32.mrb[0].mxu0
    %133 = vmatprep.mubr.f32.mxu0 0.0
    %134 = vmatmul.mubr.f32.gmra.mrb[0].mxu0 %v52
    %v135 = vpop.f32.mrb[0].mxu0
    %v136 = vadd.f32 %v35, %v135
    %v137 = vpop.f32.mrb[0].mxu0
    %138 = vmatprep.mubr.f32.mxu0 0.0
    %139 = vmatmul.mubr.f32.gmra.mrb[0].mxu0 %v55
    %v140 = vpop.f32.mrb[0].mxu0
    %v141 = vadd.f32 %v40, %v140
    %v142 = vpop.f32.mrb[0].mxu0
    %143 = vmatprep.mubr.f32.mxu0 0.0
    %144 = vmatmul.mubr.f32.gmra.mrb[0].mxu0 %v58
    %v145 = vpop.f32.mrb[0].mxu0
    %v146 = vadd.f32 %v45, %v145
    %v147 = vpop.f32.mrb[0].mxu0
    %148 = vdwg.mxu0
    %v149 = vmax.f32 %v131, 0.0
    %v150 = vmax.f32 %v136, 0.0
    %v151 = vmax.f32 %v141, 0.0
    %v152 = vmax.f32 %v146, 0.0
    %v153 = vmul.f32 %v149, %v149
    %v154 = vmul.f32 %v150, %v150
    %v155 = vmul.f32 %v151, %v151
    %v156 = vmul.f32 %v152, %v152
    %v157 = vld [vmem:[%s3] sm:$0x3]
    %vm158 = vcmask 261120
    %v160 = vsel %vm158, %v157, 0
    %162 = vmatprep.subr.mxu0 0.0
    %163 = vmatpush1.msra.mxu0 %v153
    %164 = vmatprep.subr.mxu0 0.0
    %165 = vmatpush1.msra.mxu0 %v154
    %166 = vmatprep.subr.mxu0 0.0
    %167 = vmatpush1.msra.mxu0 %v155
    %168 = vmatprep.subr.mxu0 0.0
    %169 = vmatpush1.msra.mxu0 %v156
    %170 = vmatprep.subr.mxu0 0.0
    %171 = vmatpush1.msra.mxu0 0.0
    %172 = vmatprep.subr.mxu0 0.0
    %173 = vmatpush1.msra.mxu0 0.0
    %174 = vmatprep.subr.mxu0 0.0
    %175 = vmatpush1.msra.mxu0 0.0
    %176 = vmatprep.subr.mxu0 0.0
    %177 = vmatpush1.msra.mxu0 0.0
    %178 = vmatprep.subr.mxu0 0.0
    %179 = vmatpush1.msra.mxu0 0.0
    %180 = vmatprep.subr.mxu0 0.0
    %181 = vmatpush1.msra.mxu0 0.0
    %182 = vmatprep.subr.mxu0 0.0
    %183 = vmatpush1.msra.mxu0 0.0
    %184 = vmatprep.subr.mxu0 0.0
    %185 = vmatpush1.msra.mxu0 0.0
    %186 = vmatprep.subr.mxu0 0.0
    %187 = vmatpush1.msra.mxu0 0.0
    %188 = vmatprep.subr.mxu0 0.0
    %189 = vmatpush1.msra.mxu0 0.0
    %190 = vmatprep.subr.mxu0 0.0
    %191 = vmatpush1.msra.mxu0 0.0
    %192 = vmatprep.subr.mxu0 0.0
    %193 = vmatpush1.msra.mxu0 0.0
    %194 = vmatprep.subr.mxu0 0.0
    %195 = vmatpush1.msra.mxu0 0.0
    %196 = vmatprep.subr.mxu0 0.0
    %197 = vmatpush1.msra.mxu0 0.0
    %198 = vmatprep.subr.mxu0 0.0
    %199 = vmatpush1.msra.mxu0 0.0
    %200 = vmatprep.subr.mxu0 0.0
    %201 = vmatpush1.msra.mxu0 0.0
    %202 = vmatprep.subr.mxu0 0.0
    %203 = vmatpush1.msra.mxu0 0.0
    %204 = vmatprep.subr.mxu0 0.0
    %205 = vmatpush1.msra.mxu0 0.0
    %206 = vmatprep.subr.mxu0 0.0
    %207 = vmatpush1.msra.mxu0 0.0
    %208 = vmatprep.subr.mxu0 0.0
    %209 = vmatpush1.msra.mxu0 0.0
    %210 = vmatprep.subr.mxu0 0.0
    %211 = vmatpush1.msra.mxu0 0.0
    %212 = vmatprep.subr.mxu0 0.0
    %213 = vmatpush1.msra.mxu0 0.0
    %214 = vmatprep.subr.mxu0 0.0
    %215 = vmatpush1.msra.mxu0 0.0
    %216 = vmatprep.subr.mxu0 0.0
    %217 = vmatpush1.msra.mxu0 0.0
    %218 = vmatprep.subr.mxu0 0.0
    %219 = vmatpush1.msra.mxu0 0.0
    %220 = vmatprep.subr.mxu0 0.0
    %221 = vmatpush1.msra.mxu0 0.0
    %222 = vmatprep.subr.mxu0 0.0
    %223 = vmatpush1.msra.mxu0 0.0
    %224 = vmatprep.subr.mxu0 0.0
    %225 = vmatpush1.msra.mxu0 0.0
    %226 = vmatprep.mubr.f32.mxu0 0.0
    %227 = vmatmul.mubr.f32.gmra.mrb[0].mxu0 %v160
    %v228 = vpop.f32.mrb[0].mxu0
    %v229 = vadd.f32 0.0, %v228
    %v230 = vpop.f32.mrb[0].mxu0
    %231 = vdwg.mxu0
    %vm232 = vcmask 58368
    %233 = vst.msk [vmem:[#allocation2] sm:$0x3] %vm232, %v229
    // Predicated region
    $region18: #{tpu_custom_call.1} parent=1 // pred_check
      _
    $region19: #{tpu_custom_call.1} parent=1 // pred_check_branch
      %235 = sbr.rel (0) target = $region21
    $region20: #{tpu_custom_call.1} parent=1 // pred_region
      %s237 = ssub.s32 32, 32
      %238 = vsyncadd [#allocation3], %s237
      %s240 = sshll.u32 [#allocation2], 4
      %s241 = int_to_ptr.vmem [resolvable:$true] %s240
      %243 = dma.vmem_to_hbm [thread:$0]  %s241, 32, %s4, [#allocation3]
    $region21: #{tpu_custom_call.1} parent=1 // pred_fallthru
      _
    // Predicated region
    $region22: #{tpu_custom_call.1} parent=1 // pred_check
      _
    $region23: #{tpu_custom_call.1} parent=1 // pred_check_branch
      %245 = sbr.rel (0) target = $region25
    $region24: #{tpu_custom_call.1} parent=1 // pred_region
      %246 = dma.done [#allocation3], 32
    $region25: #{tpu_custom_call.1} parent=1 // pred_fallthru
      _
    %247 = vsyncpa [#allocation3], 1

</llo_original>
